<compile_context>
chip_gen: v5e
topology: v5e:2x2
jax: 0.10.0
libtpu: 0.0.40
codegen_flags: <defaults>
</compile_context>

<pallas_src>
import functools

import jax
import jax.numpy as jnp
from jax.experimental import pallas as pl
from jax.experimental.pallas import tpu as pltpu


def _round_up(x, m):
    return (x + m - 1) // m * m


def _codebook_kernel(x_ref, e_ref, e2_ref, q_ref, ind_ref):
    """One row-tile of flattened inputs vs the full (resident) codebook.

    x_ref:   (tm, D)   f32/bf16  input rows (compute dtype, cast in wrapper)
    e_ref:   (Cp, D)   f32/bf16  codebook rows (single resident copy)
    e2_ref:  (1,  Cp)  f32       0.5*||embed||^2 per code, +inf on padded codes
    q_ref:   (tm, D)   x.dtype   out: quantized rows
    ind_ref: (1,  tm)  i32       out: selected code per row (lane-dense)
    """
    x = x_ref[...]
    e = e_ref[...]
    e_mm = e if e.dtype == x.dtype else e.astype(x.dtype)

    # argmax_c -(||x||^2 - 2 x.e_c + ||e_c||^2) == argmax_c (x.e_c - 0.5||e_c||^2)
    xe = jax.lax.dot_general(x, e_mm, (((1,), (1,)), ((), ())),
                             preferred_element_type=jnp.float32)      # (tm, Cp)
    score = xe - e2_ref[...]                                          # (tm, Cp)

    cp = score.shape[-1]
    m = jnp.max(score, axis=-1, keepdims=True)                        # (tm, 1)
    iota = jax.lax.broadcasted_iota(jnp.int32, score.shape, 1)        # (tm, Cp)
    # first-occurrence tie break, matching torch .max(dim=-1).indices
    ind_col = jnp.min(jnp.where(score == m, iota, cp),
                      axis=-1, keepdims=True)                         # (tm, 1)
    hit = iota == ind_col                                             # (tm, Cp)
    onehot_f = hit.astype(jnp.float32)
    onehot_e = onehot_f if e.dtype == jnp.float32 else hit.astype(e.dtype)

    # quantize = embed[ind] via exact one-hot matmul on the MXU.
    q = jnp.dot(onehot_e, e, preferred_element_type=jnp.float32)      # (tm, D)
    q_ref[...] = q.astype(q_ref.dtype)

    # Lane-dense index row: iota[:8] (8, Cp) @ onehot^T -> (8, tm); row 0 holds
    # the per-row code index exactly (integers < 2^24 are exact in f32).
    iota_rows = iota[0:8, :].astype(jnp.float32)
    ind_mat = jax.lax.dot_general(iota_rows, onehot_f,
                                  (((1,), (1,)), ((), ())),
                                  preferred_element_type=jnp.float32)  # (8, tm)
    ind_ref[...] = ind_mat[0:1, :].astype(jnp.int32)


@functools.partial(jax.jit, static_argnames=("tm", "use_bf16_matmul"))
def euclidean_codebook_forward(x, embed, *, tm=None, use_bf16_matmul=None):
    """Eval-mode forward of EuclideanCodebook.

    x:     (..., dim) float
    embed: (codebook_size, dim) float
    returns (quantize: (..., dim) in x.dtype, embed_ind: (...,) int32)
    """
    shape = x.shape
    dim = shape[-1]
    c, d = embed.shape
    assert d == dim, "embedding dim mismatch"
    assert c < (1 << 24), "codebook_size must be < 2^24 for the f32 index trick"

    # bf16 MXU path: default for bf16 inputs (gather in bf16 stays exact);
    # opt-in only for f32 inputs (bf16 rounding can flip a near-tie argmax).
    if use_bf16_matmul is None:
        use_bf16_matmul = x.dtype == jnp.bfloat16
    compute_dtype = jnp.bfloat16 if use_bf16_matmul else jnp.float32
    e_dtype = jnp.bfloat16 if x.dtype == jnp.bfloat16 else jnp.float32

    flatten = x.reshape(-1, dim).astype(compute_dtype)
    m_total = flatten.shape[0]
    c_pad = _round_up(c, 128)

    # Row tile: bigger when the codebook is small; ensure >= 2 grid steps so
    # both v7x TensorCores get work; rows are NOT padded (Pallas masks the
    # partial last row tile, and the wrapper discards the tail indices).
    if tm is None:
        tm = 512 if c_pad <= 1024 else 256
    tm_eff = min(tm, _round_up(m_total, 8))
    if pl.cdiv(m_total, tm_eff) < 2 and m_total > 8:
        tm_eff = _round_up(pl.cdiv(m_total, 2), 8)
    num_tiles = pl.cdiv(m_total, tm_eff)

    # Single codebook copy; padded codes masked out of the argmax via +inf norm.
    e_p = embed.astype(e_dtype)
    if c_pad != c:
        e_p = jnp.zeros((c_pad, dim), e_dtype).at[:c, :].set(e_p)
    e32 = e_p.astype(jnp.float32)
    e2_half = 0.5 * jnp.sum(e32 * e32, axis=-1)                         # (Cp,)
    e2_half = jnp.where(jnp.arange(c_pad) < c, e2_half, jnp.inf)[None, :]

    # Scoped-VMEM budget: 1x codebook + double-buffered tiles + intermediates.
    d_l = _round_up(dim, 128)
    c_l = _round_up(c_pad, 128)
    vmem_needed = (
        c_pad * d_l * jnp.dtype(e_dtype).itemsize                # codebook (1 buf)
        + 2 * 8 * c_l * 4                                        # 0.5*||e||^2
        + 2 * tm_eff * d_l * jnp.dtype(compute_dtype).itemsize   # x tiles
        + 2 * tm_eff * d_l * jnp.dtype(x.dtype).itemsize         # q tiles
        + 2 * 8 * _round_up(tm_eff, 128) * 4                     # ind tiles
        + 4 * tm_eff * c_l * 4                                   # score/onehot/iota
    )
    try:
        phys_vmem = int(pltpu.get_tpu_info().vmem_capacity_bytes)
    except Exception:
        phys_vmem = 64 << 20                                     # v7x-safe fallback
    vmem_limit = min(max(vmem_needed + (8 << 20), 32 << 20),
                     int(phys_vmem * 0.9))

    q, ind_tiles = pl.pallas_call(
        _codebook_kernel,
        out_shape=(
            jax.ShapeDtypeStruct((m_total, dim), x.dtype),
            jax.ShapeDtypeStruct((num_tiles, 1, tm_eff), jnp.int32),
        ),
        grid_spec=pltpu.PrefetchScalarGridSpec(
            num_scalar_prefetch=0,
            grid=(num_tiles,),
            in_specs=[
                pl.BlockSpec((tm_eff, dim), lambda i: (i, 0)),         # inputs
                pl.BlockSpec((c_pad, dim), lambda i: (0, 0),           # codebook
                             pipeline_mode=pl.Buffered(1)),
                pl.BlockSpec((1, c_pad), lambda i: (0, 0),             # 0.5||e||^2
                             pipeline_mode=pl.Buffered(1)),
            ],
            out_specs=[
                pl.BlockSpec((tm_eff, dim), lambda i: (i, 0)),         # quantize
                pl.BlockSpec((None, 1, tm_eff), lambda i: (i, 0, 0)),  # indices
            ],
        ),
        compiler_params=pltpu.CompilerParams(
            dimension_semantics=("parallel",),
            vmem_limit_bytes=int(vmem_limit)),
    )(flatten, e_p, e2_half)

    quantize = q.reshape(shape)
    ind = ind_tiles.reshape(-1)[:m_total].reshape(shape[:-1])
    return quantize, ind


def _reference(x, embed):
    flatten = x.reshape(-1, x.shape[-1]).astype(jnp.float32)
    e = embed.astype(jnp.float32)
    dist = -(jnp.sum(flatten ** 2, axis=1, keepdims=True)
             - 2.0 * flatten @ e.T
             + jnp.sum(e ** 2, axis=1)[None, :])
    ind = jnp.argmax(dist, axis=-1)
    q = embed[ind]
    return q.reshape(x.shape), ind.reshape(x.shape[:-1])


def _check_exact(x, embed, **kw):
    quantize, embed_ind = euclidean_codebook_forward(x, embed, **kw)
    jax.block_until_ready((quantize, embed_ind))
    q_ref, ind_ref = _reference(x, embed)
    assert quantize.shape == x.shape and quantize.dtype == x.dtype
    assert embed_ind.shape == x.shape[:-1]
    assert jnp.array_equal(embed_ind, ind_ref.astype(embed_ind.dtype))
    assert jnp.allclose(quantize, q_ref, atol=1e-5, rtol=1e-5)


if __name__ == "__main__":
    key = jax.random.PRNGKey(0)

    # Config 1: the module's nominal small shapes (f32, exact f32 path).
    dim, codebook_size, batch, seq = 32, 128, 2, 16
    k_embed, k_x, key = jax.random.split(key, 3)
    embed = jax.random.normal(k_embed, (codebook_size, dim), jnp.float32)
    x = jax.random.normal(k_x, (batch, seq, dim), jnp.float32)
    _check_exact(x, embed)

    # Config 2: non-128-multiple feature/code dims and a ragged row tail.
    dim2, codebook_size2, batch2, seq2 = 48, 200, 2, 13
    k_embed2, k_x2, key = jax.random.split(key, 3)
    embed2 = jax.random.normal(k_embed2, (codebook_size2, dim2), jnp.float32)
    x2 = jax.random.normal(k_x2, (batch2, seq2, dim2), jnp.float32)
    _check_exact(x2, embed2)

    # Config 3: bf16 inputs exercise the bf16 MXU path (single bf16 codebook).
    x3 = x.astype(jnp.bfloat16)
    embed3 = embed.astype(jnp.bfloat16)
    q3, ind3 = euclidean_codebook_forward(x3, embed3)
    jax.block_until_ready((q3, ind3))
    assert q3.dtype == jnp.bfloat16 and q3.shape == x3.shape
    assert ind3.shape == x3.shape[:-1]
    assert jnp.all((ind3 >= 0) & (ind3 < codebook_size))
    # quantize is exactly the selected (bf16) codebook rows.
    assert jnp.array_equal(q3, embed3[ind3])
    # selected codes are (near-)optimal under the exact f32 distance.
    fl3 = x3.reshape(-1, dim).astype(jnp.float32)
    e3f = embed3.astype(jnp.float32)
    dist3 = -(jnp.sum(fl3 ** 2, axis=1, keepdims=True)
              - 2.0 * fl3 @ e3f.T + jnp.sum(e3f ** 2, axis=1)[None, :])
    best3 = jnp.max(dist3, axis=-1)
    chosen3 = jnp.take_along_axis(dist3, ind3.reshape(-1, 1), axis=-1)[:, 0]
    assert jnp.all(chosen3 >= best3 - 5e-2)

    print("KERNEL_OK")
</pallas_src>

<mosaic_0001>
module attributes {stable_mosaic.version = 11 : i64} {
  func.func @_codebook_kernel(%arg0: i32, %arg1: memref<16x32xf32, #tpu.memory_space<vmem>>, %arg2: memref<128x32xf32, #tpu.memory_space<vmem>>, %arg3: memref<1x128xf32, #tpu.memory_space<vmem>>, %arg4: memref<16x32xf32, #tpu.memory_space<vmem>>, %arg5: memref<1x1x16xi32, #tpu.memory_space<vmem>>) attributes {dimension_semantics = [#tpu.dimension_semantics<parallel>], iteration_bounds = array<i64: 2>, scalar_prefetch = 0 : i64, scratch_operands = 0 : i64, tpu.core_type = #tpu.core_type<tc>, window_params = [{transform_indices = @transform_0, window_bounds = array<i64: 16, 32>}, {pipeline_mode = #tpu.pipeline_mode<synchronous>, transform_indices = @transform_1, window_bounds = array<i64: 128, 32>}, {pipeline_mode = #tpu.pipeline_mode<synchronous>, transform_indices = @transform_2, window_bounds = array<i64: 1, 128>}, {transform_indices = @transform_3, window_bounds = array<i64: 16, 32>}, {transform_indices = @transform_4, window_bounds = array<i64: 1, 1, 16>}]} {
    %c0 = arith.constant 0 : index
    %c0_0 = arith.constant 0 : index
    %0 = vector.load %arg1[%c0, %c0_0] : memref<16x32xf32, #tpu.memory_space<vmem>>, vector<16x32xf32>
    %c0_1 = arith.constant 0 : index
    %c0_2 = arith.constant 0 : index
    %1 = vector.load %arg2[%c0_1, %c0_2] : memref<128x32xf32, #tpu.memory_space<vmem>>, vector<128x32xf32>
    %cst = arith.constant dense<0.000000e+00> : vector<16x128xf32>
    %2 = tpu.matmul %0, %1, %cst {dimension_numbers = #tpu.dot_dimension_numbers<[1], [1], [0], [0], [0, 0, 1, 0], [], []>} : vector<16x32xf32>, vector<128x32xf32>, vector<16x128xf32> -> vector<16x128xf32>
    %c0_3 = arith.constant 0 : index
    %c0_4 = arith.constant 0 : index
    %3 = vector.load %arg3[%c0_3, %c0_4] : memref<1x128xf32, #tpu.memory_space<vmem>>, vector<1x128xf32>
    %4 = vector.broadcast %3 : vector<1x128xf32> to vector<16x128xf32>
    %5 = arith.subf %2, %4 : vector<16x128xf32>
    %cst_5 = arith.constant dense<0xFF800000> : vector<16xf32>
    %6 = vector.multi_reduction <maximumf>, %5, %cst_5 [1] : vector<16x128xf32> to vector<16xf32>
    %7 = vector.shape_cast %6 : vector<16xf32> to vector<16x1xf32>
    %8 = tpu.iota {dimensions = array<i32: 1>} : vector<16x128xi32>
    %9 = vector.broadcast %7 : vector<16x1xf32> to vector<16x128xf32>
    %10 = arith.cmpf oeq, %5, %9 : vector<16x128xf32>
    %c128_i32 = arith.constant 128 : i32
    %11 = vector.broadcast %c128_i32 : i32 to vector<16x128xi32>
    %12 = arith.select %10, %8, %11 : vector<16x128xi1>, vector<16x128xi32>
    %cst_6 = arith.constant dense<2147483647> : vector<16xi32>
    %13 = vector.multi_reduction <minsi>, %12, %cst_6 [1] : vector<16x128xi32> to vector<16xi32>
    %14 = vector.shape_cast %13 : vector<16xi32> to vector<16x1xi32>
    %15 = vector.broadcast %14 : vector<16x1xi32> to vector<16x128xi32>
    %16 = arith.cmpi eq, %8, %15 : vector<16x128xi32>
    %17 = arith.extui %16 : vector<16x128xi1> to vector<16x128xi32>
    %18 = arith.sitofp %17 : vector<16x128xi32> to vector<16x128xf32>
    %cst_7 = arith.constant dense<0.000000e+00> : vector<16x32xf32>
    %19 = tpu.matmul %18, %1, %cst_7 {dimension_numbers = #tpu.dot_dimension_numbers<[1], [0], [0], [1], [0, 0, 1, 1], [], []>} : vector<16x128xf32>, vector<128x32xf32>, vector<16x32xf32> -> vector<16x32xf32>
    %c0_8 = arith.constant 0 : index
    %c0_9 = arith.constant 0 : index
    %20 = vector.load %arg4[%c0_8, %c0_9] : memref<16x32xf32, #tpu.memory_space<vmem>>, vector<16x32xf32>
    tpu.vector_store %arg4[%c0_8, %c0_9], %19 {strides = array<i32>} : memref<16x32xf32, #tpu.memory_space<vmem>>, vector<16x32xf32>,
    %21 = vector.extract_strided_slice %8 {offsets = [0, 0], sizes = [8, 128], strides = [1, 1]} : vector<16x128xi32> to vector<8x128xi32>
    %22 = arith.sitofp %21 : vector<8x128xi32> to vector<8x128xf32>
    %cst_10 = arith.constant dense<0.000000e+00> : vector<8x16xf32>
    %23 = tpu.matmul %22, %18, %cst_10 {dimension_numbers = #tpu.dot_dimension_numbers<[1], [1], [0], [0], [0, 0, 1, 0], [], []>} : vector<8x128xf32>, vector<16x128xf32>, vector<8x16xf32> -> vector<8x16xf32>
    %24 = vector.extract_strided_slice %23 {offsets = [0, 0], sizes = [1, 16], strides = [1, 1]} : vector<8x16xf32> to vector<1x16xf32>
    %25 = arith.fptosi %24 : vector<1x16xf32> to vector<1x16xi32>
    %c0_11 = arith.constant 0 : index
    %c0_12 = arith.constant 0 : index
    %c0_13 = arith.constant 0 : index
    %26 = vector.load %arg5[%c0_11, %c0_12, %c0_13] : memref<1x1x16xi32, #tpu.memory_space<vmem>>, vector<1x1x16xi32>
    %27 = vector.shape_cast %26 : vector<1x1x16xi32> to vector<1x16xi32>
    %28 = vector.shape_cast %25 : vector<1x16xi32> to vector<1x1x16xi32>
    tpu.vector_store %arg5[%c0_11, %c0_12, %c0_13], %28 {strides = array<i32>} : memref<1x1x16xi32, #tpu.memory_space<vmem>>, vector<1x1x16xi32>,
    return
  }
  func.func @transform_0(%arg0: i32) -> (i32, i32) {
    %c0_i32 = arith.constant 0 : i32
    %c0_i32_0 = arith.constant 0 : i32
    return %arg0, %c0_i32 : i32, i32
  }
  func.func @transform_1(%arg0: i32) -> (i32, i32) {
    %c0_i32 = arith.constant 0 : i32
    %c0_i32_0 = arith.constant 0 : i32
    %c0_i32_1 = arith.constant 0 : i32
    return %c0_i32, %c0_i32_0 : i32, i32
  }
  func.func @transform_2(%arg0: i32) -> (i32, i32) {
    %c0_i32 = arith.constant 0 : i32
    %c0_i32_0 = arith.constant 0 : i32
    %c0_i32_1 = arith.constant 0 : i32
    return %c0_i32, %c0_i32_0 : i32, i32
  }
  func.func @transform_3(%arg0: i32) -> (i32, i32) {
    %c0_i32 = arith.constant 0 : i32
    %c0_i32_0 = arith.constant 0 : i32
    return %arg0, %c0_i32 : i32, i32
  }
  func.func @transform_4(%arg0: i32) -> (i32, i32, i32) {
    %c0_i32 = arith.constant 0 : i32
    %c0_i32_0 = arith.constant 0 : i32
    %c0_i32_1 = arith.constant 0 : i32
    return %arg0, %c0_i32, %c0_i32_0 : i32, i32, i32
  }
}

</mosaic_0001>

<llo_original>
// kernel: euclidean_codebook_forward.1
$region0: #{euclidean_codebook_forward.1}
  #allocation0 [shape = 'u32[]', space=smem, size = 0x4, offset = 0x4, fixed_abs, tag = 'smem constant byte address 0x4 - core index']
  #allocation1 [shape = 'u32[72,128]{1,0:T(1,128)}', space=vmem, size = 0x9000, scoped, tag = 'internal scratch']
  %s0 = inlined_call_operand.vmem [shape: f32[32,32], index: 0, kind: input, shape index: {}]
  %s1 = inlined_call_operand.vmem [shape: f32[128,32], index: 1, kind: input, shape index: {}]
  %s2 = inlined_call_operand.vmem [shape: f32[1,128], index: 2, kind: input, shape index: {}]
  %s3 = inlined_call_operand.hbm [shape: f32[32,32], index: 3, kind: output, shape index: {0}]
  %s4 = inlined_call_operand.hbm [shape: s32[2,1,16], index: 4, kind: output, shape index: {1}]
  %5 = xla_tuple %s3, %s4
  %s6 = sld [smem:[#allocation0]]
  $region53: #{euclidean_codebook_forward.1} parent=0
    _
  %s8 = ssub.s32 1, %s6
  %s9 = scalar_select 0, %s8, %s6
  $region1: #{euclidean_codebook_forward.1} parent=0
    #allocation2 [shape = 'u8[16384]{0}', space=vmem, size = 0x4000, scoped, tag = 'output window, operand 0']
    #allocation3 [shape = 's32[2]{0}', space=sflag, size = 0x8, scoped, tag = 'scoped memory for euclidean_codebook_forward.1']
    #allocation4 [shape = 'u8[1024]{0}', space=vmem, size = 0x400, scoped, tag = 'output window, operand 1']
    #allocation5 [shape = 's32[2]{0}', space=sflag, size = 0x8, scoped, tag = 'scoped memory for euclidean_codebook_forward.1']
    %10 = vsyncpa [#allocation3], 0
    %s11 = scalar_lea.sflag [#allocation3], 1
    %12 = vsyncpa %s11, 0
    %13 = vsyncpa [#allocation5], 0
    %s14 = scalar_lea.sflag [#allocation5], 1
    %15 = vsyncpa %s14, 0
    loop: start=0, step=1, limit=4
    $region2: #{euclidean_codebook_forward.1} parent=1 // loop_pre_header
      _
    $region3: #{euclidean_codebook_forward.1} parent=1 // loop_header
      %s17 = sphi 0, %s21
      %p18 = scmp.ge.s32.totalorder %s17, 4
      %s27 = sphi 0, %s29
      %s30 = sphi 0, %s27
      %s31 = sphi 0, %s30
      %s47 = sphi 0, %s31
      %s51 = sphi 0, %s51
      %s53 = sphi 0, %s51
      %s54 = sphi 0, %s53
      %s68 = sphi 0, %s54
      %s72 = sphi 0, %s72
      %s74 = sphi 0, %s72
      %s75 = sphi 0, %s74
      %s89 = sphi 0, %s75
      %s95 = sphi 0, %s97
      %s98 = sphi 0, %s95
      %s99 = sphi 0, %s98
      %s115 = sphi 0, %s99
      %s121 = sphi 0, %s123
      %s124 = sphi 0, %s121
      %s125 = sphi 0, %s124
      %s141 = sphi 0, %s125
    $region4: #{euclidean_codebook_forward.1} parent=1 // loop_header_branch
      %20 = sbr.rel (%p18) target = $region8
    $region5: #{euclidean_codebook_forward.1} parent=1 // loop_body
      %s22 = ssub.s32 %s17, 1
      %s23 = ssub.s32 %s17, 2
      %s24 = sadd.s32 %s17, 1
      %s25 = ssub.s32 %s17, %s24
      %p26 = scmp.eq.s32.totalorder %s25, 0
      %s28 = sadd.s32 %s27, 1
      %s29 = scalar_select %p26, %s27, %s28
      %p32 = pneg %p26
      %p33 = scmp.eq.s32.totalorder %s17, 1
      %p34 = por %p32, %p33
      %p35 = scmp.ne.s32.totalorder %s27, %s30
      %p36 = scmp.eq.s32.totalorder %s17, 0
      %p37 = por %p35, %p36
      %p38 = scmp.ne.s32.totalorder %s27, %s30
      %p39 = scmp.eq.s32.totalorder %s22, 1
      %p40 = por %p38, %p39
      %p41 = scmp.ne.s32.totalorder %s30, %s31
      %p42 = scmp.eq.s32.totalorder %s22, 0
      %p43 = por %p41, %p42
      %p44 = scmp.ne.s32.totalorder %s30, %s31
      %p45 = scmp.eq.s32.totalorder %s23, 1
      %p46 = por %p44, %p45
      %p48 = scmp.ne.s32.totalorder %s31, %s47
      %p49 = scmp.eq.s32.totalorder %s23, 0
      %p50 = por %p48, %p49
      %s52 = sadd.s32 %s51, 1
      %p55 = scmp.eq.s32.totalorder %s17, 1
      %p56 = scmp.ne.s32.totalorder %s51, %s53
      %p57 = scmp.eq.s32.totalorder %s17, 0
      %p58 = por %p56, %p57
      %p59 = scmp.ne.s32.totalorder %s51, %s53
      %p60 = scmp.eq.s32.totalorder %s22, 1
      %p61 = por %p59, %p60
      %p62 = scmp.ne.s32.totalorder %s53, %s54
      %p63 = scmp.eq.s32.totalorder %s22, 0
      %p64 = por %p62, %p63
      %p65 = scmp.ne.s32.totalorder %s53, %s54
      %p66 = scmp.eq.s32.totalorder %s23, 1
      %p67 = por %p65, %p66
      %p69 = scmp.ne.s32.totalorder %s54, %s68
      %p70 = scmp.eq.s32.totalorder %s23, 0
      %p71 = por %p69, %p70
      %s73 = sadd.s32 %s72, 1
      %p76 = scmp.eq.s32.totalorder %s17, 1
      %p77 = scmp.ne.s32.totalorder %s72, %s74
      %p78 = scmp.eq.s32.totalorder %s17, 0
      %p79 = por %p77, %p78
      %p80 = scmp.ne.s32.totalorder %s72, %s74
      %p81 = scmp.eq.s32.totalorder %s22, 1
      %p82 = por %p80, %p81
      %p83 = scmp.ne.s32.totalorder %s74, %s75
      %p84 = scmp.eq.s32.totalorder %s22, 0
      %p85 = por %p83, %p84
      %p86 = scmp.ne.s32.totalorder %s74, %s75
      %p87 = scmp.eq.s32.totalorder %s23, 1
      %p88 = por %p86, %p87
      %p90 = scmp.ne.s32.totalorder %s75, %s89
      %p91 = scmp.eq.s32.totalorder %s23, 0
      %p92 = por %p90, %p91
      %s93 = ssub.s32 %s17, %s24
      %p94 = scmp.eq.s32.totalorder %s93, 0
      %s96 = sadd.s32 %s95, 1
      %s97 = scalar_select %p94, %s95, %s96
      %p100 = pneg %p94
      %p101 = scmp.eq.s32.totalorder %s17, 1
      %p102 = por %p100, %p101
      %p103 = scmp.ne.s32.totalorder %s95, %s98
      %p104 = scmp.eq.s32.totalorder %s17, 0
      %p105 = por %p103, %p104
      %p106 = scmp.ne.s32.totalorder %s95, %s98
      %p107 = scmp.eq.s32.totalorder %s22, 1
      %p108 = por %p106, %p107
      %p109 = scmp.ne.s32.totalorder %s98, %s99
      %p110 = scmp.eq.s32.totalorder %s22, 0
      %p111 = por %p109, %p110
      %p112 = scmp.ne.s32.totalorder %s98, %s99
      %p113 = scmp.eq.s32.totalorder %s23, 1
      %p114 = por %p112, %p113
      %p116 = scmp.ne.s32.totalorder %s99, %s115
      %p117 = scmp.eq.s32.totalorder %s23, 0
      %p118 = por %p116, %p117
      %s119 = ssub.s32 %s17, %s24
      %p120 = scmp.eq.s32.totalorder %s119, 0
      %s122 = sadd.s32 %s121, 1
      %s123 = scalar_select %p120, %s121, %s122
      %p126 = pneg %p120
      %p127 = scmp.eq.s32.totalorder %s17, 1
      %p128 = por %p126, %p127
      %p129 = scmp.ne.s32.totalorder %s121, %s124
      %p130 = scmp.eq.s32.totalorder %s17, 0
      %p131 = por %p129, %p130
      %p132 = scmp.ne.s32.totalorder %s121, %s124
      %p133 = scmp.eq.s32.totalorder %s22, 1
      %p134 = por %p132, %p133
      %p135 = scmp.ne.s32.totalorder %s124, %s125
      %p136 = scmp.eq.s32.totalorder %s22, 0
      %p137 = por %p135, %p136
      %p138 = scmp.ne.s32.totalorder %s124, %s125
      %p139 = scmp.eq.s32.totalorder %s23, 1
      %p140 = por %p138, %p139
      %p142 = scmp.ne.s32.totalorder %s125, %s141
      %p143 = scmp.eq.s32.totalorder %s23, 0
      %p144 = por %p142, %p143
      %p145 = scmp.le.s32.totalorder 1, %s17
      %p146 = scmp.lt.s32.totalorder %s17, 3
      %p147 = pnand %p145, %p146
      %p148 = pneg %p147
      // Predicated region
      $region9: #{euclidean_codebook_forward.1} parent=5 // pred_check
        _
      $region10: #{euclidean_codebook_forward.1} parent=5 // pred_check_branch
        %150 = sbr.rel (%p147) target = $region12
      $region11: #{euclidean_codebook_forward.1} parent=5 // pred_region
        %s151 = ssub.s32 %s17, 1
        // Predicated region
        $region13: #{euclidean_codebook_forward.1} parent=11 // pred_check
          %p152 = pneg %p64
        $region14: #{euclidean_codebook_forward.1} parent=11 // pred_check_branch
          %154 = sbr.rel (%p152) target = $region16
        $region15: #{euclidean_codebook_forward.1} parent=11 // pred_region
          _
        $region16: #{euclidean_codebook_forward.1} parent=11 // pred_fallthru
          _
        // Predicated region
        $region17: #{euclidean_codebook_forward.1} parent=11 // pred_check
          %p155 = pneg %p85
        $region18: #{euclidean_codebook_forward.1} parent=11 // pred_check_branch
          %157 = sbr.rel (%p155) target = $region20
        $region19: #{euclidean_codebook_forward.1} parent=11 // pred_region
          _
        $region20: #{euclidean_codebook_forward.1} parent=11 // pred_fallthru
          _
      $region12: #{euclidean_codebook_forward.1} parent=5 // pred_fallthru
        _
      %p158 = scmp.lt.s32.totalorder %s17, 2
      // Predicated region
      $region21: #{euclidean_codebook_forward.1} parent=5 // pred_check
        %p159 = pneg %p158
      $region22: #{euclidean_codebook_forward.1} parent=5 // pred_check_branch
        %161 = sbr.rel (%p159) target = $region24
      $region23: #{euclidean_codebook_forward.1} parent=5 // pred_region
        // Predicated region
        $region25: #{euclidean_codebook_forward.1} parent=23 // pred_check
          %p162 = pneg %p37
        $region26: #{euclidean_codebook_forward.1} parent=23 // pred_check_branch
          %164 = sbr.rel (%p162) target = $region28
        $region27: #{euclidean_codebook_forward.1} parent=23 // pred_region
          %s165 = smul.u32 2, %s17
          %p166 = scmp.lt.s32.totalorder %s165, 3
          %s167 = scalar_select %p166, %s165, 3
          %s168 = smul.addr %s167, 8
          %s169 = scalar_lea.vmem %s0, %s168
          %s170 = smul.u32 2, %s17
        $region28: #{euclidean_codebook_forward.1} parent=23 // pred_fallthru
          _
      $region24: #{euclidean_codebook_forward.1} parent=5 // pred_fallthru
        _
      %p171 = scmp.le.s32.totalorder 1, %s17
      %p172 = scmp.lt.s32.totalorder %s17, 3
      %p173 = pnand %p171, %p172
      %p174 = pneg %p173
      // Predicated region
      $region29: #{euclidean_codebook_forward.1} parent=5 // pred_check
        _
      $region30: #{euclidean_codebook_forward.1} parent=5 // pred_check_branch
        %176 = sbr.rel (%p173) target = $region32
      $region31: #{euclidean_codebook_forward.1} parent=5 // pred_region
        %s177 = ssub.s32 %s17, 1
        %s178 = smul.u32 2, %s22
        %p179 = scmp.lt.s32.totalorder %s178, 3
        %s180 = scalar_select %p179, %s178, 3
        %s181 = smul.addr %s180, 8
        %s182 = scalar_lea.vmem %s0, %s181
        %p183 = pneg %p43
        %p184 = pneg %p40
        %p185 = pneg %p64
        %p186 = pneg %p61
        %p187 = pneg %p85
        %p188 = pneg %p82
        %p189 = pneg %p111
        %p190 = pneg %p108
        %s191 = sand.u32 %s98, 1
        %s192 = scalar_lea.sflag [#allocation3], %s191
        %s193 = sand.u32 %s98, 1
        %s194 = smul.addr %s193, 16
        %s195 = scalar_lea.vmem [#allocation2], %s194
        %p196 = pneg %p137
        %p197 = pneg %p134
        %s198 = sand.u32 %s124, 1
        %s199 = scalar_lea.sflag [#allocation5], %s198
        %s200 = sand.u32 %s124, 1
        %s201 = scalar_lea.vmem [#allocation4], %s200
        %s202 = smul.u32 2, %s22
        %p203 = scmp.lt.s32.totalorder %s202, 3
        %s204 = scalar_select %p203, %s202, 3
        %s205 = smul.addr %s204, 8
        %s206 = scalar_lea.vmem %s0, %s205
        %s207 = smul.u32 2, %s22
        %s208 = smul.u32 2, %s22
        %v209 = vld [vmem:[%s206] sm:$0xff]
        %v210 = vld [vmem:[%s206 + $0x8] sm:$0xff]
        %v211 = vld [vmem:[%s1] sm:$0xff]
        %v212 = vld [vmem:[%s1 + $0x8] sm:$0xff]
        %v213 = vld [vmem:[%s1 + $0x10] sm:$0xff]
        %v214 = vld [vmem:[%s1 + $0x18] sm:$0xff]
        %v215 = vld [vmem:[%s1 + $0x20] sm:$0xff]
        %v216 = vld [vmem:[%s1 + $0x28] sm:$0xff]
        %v217 = vld [vmem:[%s1 + $0x30] sm:$0xff]
        %v218 = vld [vmem:[%s1 + $0x38] sm:$0xff]
        %v219 = vld [vmem:[%s1 + $0x40] sm:$0xff]
        %v220 = vld [vmem:[%s1 + $0x48] sm:$0xff]
        %v221 = vld [vmem:[%s1 + $0x50] sm:$0xff]
        %v222 = vld [vmem:[%s1 + $0x58] sm:$0xff]
        %v223 = vld [vmem:[%s1 + $0x60] sm:$0xff]
        %v224 = vld [vmem:[%s1 + $0x68] sm:$0xff]
        %v225 = vld [vmem:[%s1 + $0x70] sm:$0xff]
        %v226 = vld [vmem:[%s1 + $0x78] sm:$0xff]
        %vm227 = vcmask 261120
        %v229 = vsel %vm227, %v209, 0
        %v232 = vsel %vm227, %v210, 0
        %v235 = vsel %vm227, %v211, 0
        %v238 = vsel %vm227, %v212, 0
        %v241 = vsel %vm227, %v213, 0
        %v244 = vsel %vm227, %v214, 0
        %v247 = vsel %vm227, %v215, 0
        %v250 = vsel %vm227, %v216, 0
        %v253 = vsel %vm227, %v217, 0
        %v256 = vsel %vm227, %v218, 0
        %v259 = vsel %vm227, %v219, 0
        %v262 = vsel %vm227, %v220, 0
        %v265 = vsel %vm227, %v221, 0
        %v268 = vsel %vm227, %v222, 0
        %v271 = vsel %vm227, %v223, 0
        %v274 = vsel %vm227, %v224, 0
        %v277 = vsel %vm227, %v225, 0
        %v280 = vsel %vm227, %v226, 0
        %282 = vmatpush.xpose.msra.mxu0 %v280
        %283 = vmatpush.xpose.msra.mxu0 %v277
        %284 = vmatpush.xpose.msra.mxu0 %v274
        %285 = vmatpush.xpose.msra.mxu0 %v271
        %286 = vmatpush.xpose.msra.mxu0 %v268
        %287 = vmatpush.xpose.msra.mxu0 %v265
        %288 = vmatpush.xpose.msra.mxu0 %v262
        %289 = vmatpush.xpose.msra.mxu0 %v259
        %290 = vmatpush.xpose.msra.mxu0 %v256
        %291 = vmatpush.xpose.msra.mxu0 %v253
        %292 = vmatpush.xpose.msra.mxu0 %v250
        %293 = vmatpush.xpose.msra.mxu0 %v247
        %294 = vmatpush.xpose.msra.mxu0 %v244
        %295 = vmatpush.xpose.msra.mxu0 %v241
        %296 = vmatpush.xpose.msra.mxu0 %v238
        %297 = vmatpush.xpose.msra.mxu0 %v235
        %298 = vmatmul.f32.gmra.mxu0 %v229
        %v299 = vpop.f32.mrf.mxu0
        %v300 = vadd.f32 0.0, %v299
        %301 = vmatmul.f32.gmra.mxu0 %v232
        %v302 = vpop.f32.mrf.mxu0
        %v303 = vadd.f32 0.0, %v302
        %304 = vdwg.mxu0
        %v305 = vld [vmem:[%s2] sm:$0x1]
        %v307 = vperm.slane %v305, 0
        %v309 = vsub.f32 %v300, %v307
        %v310 = vsub.f32 %v303, %v307
        %311 = vmax.xlane.f32.xlu0 %v309
        %v312 = vpop.xlane.xlu0 %311
        %313 = vmax.xlane.f32.xlu0 %v310
        %v314 = vpop.xlane.xlu0 %313
        %v315 = vlaneseq
        %v316 = vand.u32 %v315, 127
        %vm317 = vcmp.eq.f32.partialorder %v309, %v312
        %vm318 = vcmp.eq.f32.partialorder %v310, %v314
        %v319 = vsel %vm317, %v316, 128
        %v320 = vsel %vm318, %v316, 128
        %v321 = vand.u32 %v319, 65535
        %v322 = vshra.s32 %v319, 16
        %v323 = vcvt.s32.f32 %v321
        %v324 = vcvt.s32.f32 %v322
        %325 = vmin.xlane.f32.xlu0 %v324
        %v326 = vpop.xlane.xlu0 %325
        %vm327 = vcmp.eq.f32.partialorder %v324, %v326
        %v328 = vsel %vm327, %v323, inf
        %329 = vmin.xlane.f32.xlu0 %v328
        %v330 = vpop.xlane.xlu0 %329
        %v331 = vcvt.f32.s32 %v330
        %v332 = vcvt.f32.s32 %v326
        %v333 = vshll.u32 %v332, 16
        %v334 = vadd.s32 %v333, %v331
        %v335 = vand.u32 %v320, 65535
        %v336 = vshra.s32 %v320, 16
        %v337 = vcvt.s32.f32 %v335
        %v338 = vcvt.s32.f32 %v336
        %339 = vmin.xlane.f32.xlu0 %v338
        %v340 = vpop.xlane.xlu0 %339
        %vm341 = vcmp.eq.f32.partialorder %v338, %v340
        %v342 = vsel %vm341, %v337, inf
        %343 = vmin.xlane.f32.xlu0 %v342
        %v344 = vpop.xlane.xlu0 %343
        %v345 = vcvt.f32.s32 %v344
        %v346 = vcvt.f32.s32 %v340
        %v347 = vshll.u32 %v346, 16
        %v348 = vadd.s32 %v347, %v345
        %vm349 = vcmp.eq.s32.totalorder %v316, %v334
        %vm350 = vcmp.eq.s32.totalorder %v316, %v348
        %v351 = vsel %vm349, 1, 0
        %v352 = vsel %vm350, 1, 0
        %v353 = vcvt.s32.f32 %v351
        %v354 = vcvt.s32.f32 %v352
        %355 = vmatpush.msra.mxu0 %v226
        %356 = vmatpush.msra.mxu0 %v225
        %357 = vmatpush.msra.mxu0 %v224
        %358 = vmatpush.msra.mxu0 %v223
        %359 = vmatpush.msra.mxu0 %v222
        %360 = vmatpush.msra.mxu0 %v221
        %361 = vmatpush.msra.mxu0 %v220
        %362 = vmatpush.msra.mxu0 %v219
        %363 = vmatpush.msra.mxu0 %v218
        %364 = vmatpush.msra.mxu0 %v217
        %365 = vmatpush.msra.mxu0 %v216
        %366 = vmatpush.msra.mxu0 %v215
        %367 = vmatpush.msra.mxu0 %v214
        %368 = vmatpush.msra.mxu0 %v213
        %369 = vmatpush.msra.mxu0 %v212
        %370 = vmatpush.msra.mxu0 %v211
        %371 = vmatmul.f32.gmra.mxu0 %v353
        %v372 = vpop.f32.mrf.mxu0
        %v373 = vadd.f32 0.0, %v372
        %374 = vmatmul.f32.gmra.mxu0 %v354
        %v375 = vpop.f32.mrf.mxu0
        %v376 = vadd.f32 0.0, %v375
        %377 = vdwg.mxu0
        %378 = vst.msk [vmem:[%s195] sm:$0xff] %vm227, %v373
        %379 = vst.msk [vmem:[%s195 + $0x8] sm:$0xff] %vm227, %v376
        %v380 = vcvt.s32.f32 %v316
        %381 = vmatpush.xpose.msra.mxu0 0.0
        %382 = vmatpush.xpose.msra.mxu0 0.0
        %383 = vmatpush.xpose.msra.mxu0 0.0
        %384 = vmatpush.xpose.msra.mxu0 0.0
        %385 = vmatpush.xpose.msra.mxu0 0.0
        %386 = vmatpush.xpose.msra.mxu0 0.0
        %387 = vmatpush.xpose.msra.mxu0 0.0
        %388 = vmatpush.xpose.msra.mxu0 0.0
        %389 = vmatpush.xpose.msra.mxu0 0.0
        %390 = vmatpush.xpose.msra.mxu0 0.0
        %391 = vmatpush.xpose.msra.mxu0 0.0
        %392 = vmatpush.xpose.msra.mxu0 0.0
        %393 = vmatpush.xpose.msra.mxu0 0.0
        %394 = vmatpush.xpose.msra.mxu0 0.0
        %395 = vmatpush.xpose.msra.mxu0 %v354
        %396 = vmatpush.xpose.msra.mxu0 %v353
        %397 = vmatmul.f32.gmra.mxu0 %v380
        %v398 = vpop.f32.mrf.mxu0
        %v399 = vadd.f32 0.0, %v398
        %400 = vdwg.mxu0
        %v401 = vcvt.f32.s32.to.zero.pseudo %v399
        %vm402 = vcmask 122880
        %403 = vst.msk [vmem:[%s201] sm:$0x1] %vm402, %v401
        %s404 = sand.u32 %s98, 1
        %s405 = scalar_lea.sflag [#allocation3], %s404
        %s406 = sand.u32 %s98, 1
        %s407 = smul.addr %s406, 16
        %s408 = scalar_lea.vmem [#allocation2], %s407
        %s409 = sand.u32 %s124, 1
        %s410 = scalar_lea.sflag [#allocation5], %s409
        %s411 = sand.u32 %s124, 1
        %s412 = scalar_lea.vmem [#allocation4], %s411
        // Predicated region
        $region33: #{euclidean_codebook_forward.1} parent=31 // pred_check
          %p413 = pneg %p108
        $region34: #{euclidean_codebook_forward.1} parent=31 // pred_check_branch
          %415 = sbr.rel (%p413) target = $region36
        $region35: #{euclidean_codebook_forward.1} parent=31 // pred_region
          %s416 = smul.u32 2, %s22
          %418 = vsyncadd %s405, 0
          %s419 = smul.addr %s416, 8
          %s420 = scalar_lea.hbm %s3, %s419
          %s421 = sshll.u32 %s408, 4
          %s422 = int_to_ptr.vmem [resolvable:$true] %s421
          %s423 = sshll.u32 %s420, 4
          %s424 = int_to_ptr.hbm [resolvable:$true] %s423
          %429 = dma.vmem_to_hbm [thread:$0]  %s422, 256, %s424, %s405, 128, 128, 8
        $region36: #{euclidean_codebook_forward.1} parent=31 // pred_fallthru
          _
        // Predicated region
        $region37: #{euclidean_codebook_forward.1} parent=31 // pred_check
          %p430 = pneg %p134
        $region38: #{euclidean_codebook_forward.1} parent=31 // pred_check_branch
          %432 = sbr.rel (%p430) target = $region40
        $region39: #{euclidean_codebook_forward.1} parent=31 // pred_region
          %434 = vsyncadd %s410, 0
          %s435 = scalar_lea.hbm %s4, %s22
          %s437 = sshll.u32 %s412, 4
          %s438 = int_to_ptr.vmem [resolvable:$true] %s437
          %s439 = sshll.u32 %s435, 4
          %s440 = int_to_ptr.hbm [resolvable:$true] %s439
          %442 = dma.vmem_to_hbm [thread:$0]  %s438, 16, %s440, %s410
        $region40: #{euclidean_codebook_forward.1} parent=31 // pred_fallthru
          _
      $region32: #{euclidean_codebook_forward.1} parent=5 // pred_fallthru
        _
      %p443 = scmp.le.s32.totalorder 2, %s17
      // Predicated region
      $region41: #{euclidean_codebook_forward.1} parent=5 // pred_check
        %p444 = pneg %p443
      $region42: #{euclidean_codebook_forward.1} parent=5 // pred_check_branch
        %446 = sbr.rel (%p444) target = $region44
      $region43: #{euclidean_codebook_forward.1} parent=5 // pred_region
        %s447 = ssub.s32 %s17, 2
        // Predicated region
        $region45: #{euclidean_codebook_forward.1} parent=43 // pred_check
          %p448 = pneg %p114
        $region46: #{euclidean_codebook_forward.1} parent=43 // pred_check_branch
          %450 = sbr.rel (%p448) target = $region48
        $region47: #{euclidean_codebook_forward.1} parent=43 // pred_region
          %s451 = sand.u32 %s99, 1
          %s452 = scalar_lea.sflag [#allocation3], %s451
          %s453 = sand.u32 %s99, 1
          %s454 = smul.addr %s453, 16
          %s455 = scalar_lea.vmem [#allocation2], %s454
          %457 = dma.done %s452, 256
        $region48: #{euclidean_codebook_forward.1} parent=43 // pred_fallthru
          _
        // Predicated region
        $region49: #{euclidean_codebook_forward.1} parent=43 // pred_check
          %p458 = pneg %p140
        $region50: #{euclidean_codebook_forward.1} parent=43 // pred_check_branch
          %460 = sbr.rel (%p458) target = $region52
        $region51: #{euclidean_codebook_forward.1} parent=43 // pred_region
          %s461 = sand.u32 %s125, 1
          %s462 = scalar_lea.sflag [#allocation5], %s461
          %s463 = sand.u32 %s125, 1
          %s464 = scalar_lea.vmem [#allocation4], %s463
          %466 = dma.done %s462, 16
        $region52: #{euclidean_codebook_forward.1} parent=43 // pred_fallthru
          _
      $region44: #{euclidean_codebook_forward.1} parent=5 // pred_fallthru
        _
    $region6: #{euclidean_codebook_forward.1} parent=1 // loop_footer
      %s21 = sadd.s32 1, %s17
    $region7: #{euclidean_codebook_forward.1} parent=1 // loop_footer_branch
      %16 = sbr.rel target = $region3
    $region8: #{euclidean_codebook_forward.1} parent=1 // loop_exit
      _
    %467 = vsyncpa [#allocation3], 1
    %s468 = scalar_lea.sflag [#allocation3], 1
    %469 = vsyncpa %s468, 1
    %470 = vsyncpa [#allocation5], 1
    %s471 = scalar_lea.sflag [#allocation5], 1
    %472 = vsyncpa %s471, 1

</llo_original>
